<compile_context>
chip_gen: v7x
topology: tpu7x:2x2x1
jax: 0.10.0
libtpu: 0.0.40
codegen_flags: <defaults>
</compile_context>

<pallas_src>
import functools

import jax
import jax.numpy as jnp
from jax import lax
from jax.experimental import pallas as pl
from jax.experimental.pallas import tpu as pltpu


# ----------------------------------------------------------------------------
# One-time calibration of pltpu.roll's rotation direction (robust across
# jax/Mosaic versions; the result is baked into the kernel as a static int).
# Returns s such that  roll(x, (s*d) % n, axis=1)[:, p] == x[:, (p + d) % n].
# ----------------------------------------------------------------------------
@functools.lru_cache(maxsize=None)
def _roll_sign():
    n = 128

    def kernel(x_ref, o_ref):
        o_ref[...] = pltpu.roll(x_ref[...], 1, axis=1)

    x = jnp.broadcast_to(jnp.arange(n, dtype=jnp.float32)[None, :], (8, n))
    r = pl.pallas_call(kernel, out_shape=jax.ShapeDtypeStruct((8, n), jnp.float32))(x)
    first = int(jax.device_get(r)[0, 0])
    if first == 1:        # roll(x, s)[p] == x[p + s]
        return 1
    return -1             # jnp.roll convention: roll(x, s)[p] == x[p - s]


# ----------------------------------------------------------------------------
# One-time probe: does this JAX support single-buffering grid-invariant
# operands via pl.BlockSpec(..., pipeline_mode=pl.Buffered(1))?
# ----------------------------------------------------------------------------
@functools.lru_cache(maxsize=None)
def _single_buffering_supported():
    if not hasattr(pl, "Buffered"):
        return False
    try:
        def k(x_ref, o_ref):
            o_ref[...] = x_ref[...]

        spec = pl.BlockSpec((8, 128), lambda i: (0, 0),
                            pipeline_mode=pl.Buffered(1))
        x = jnp.zeros((8, 128), jnp.float32)
        out = pl.pallas_call(
            k,
            out_shape=jax.ShapeDtypeStruct((8, 128), jnp.float32),
            grid=(2,),
            in_specs=[spec],
            out_specs=pl.BlockSpec((8, 128), lambda i: (0, 0)),
        )(x)
        jax.block_until_ready(out)
        return True
    except Exception:
        return False


# ----------------------------------------------------------------------------
# Fused RDB kernel (one grid step == BB batch elements)
# ----------------------------------------------------------------------------
def _make_rdb_kernel(*, C, G0, G, H, W, BB, roll_sign):
    HW = H * W
    Cmax = G0 + (C - 1) * G          # input channels of the deepest conv
    taps = [(dy, dx) for dy in range(3) for dx in range(3)]

    def kernel(x_ref, w_ref, b_ref, wlx_ref, wly_ref, bl_ref, o_ref,
               patches_ref, lff_ref):
        # ---- per-tap validity for SAME zero padding, hoisted once per step ----
        pos = lax.broadcasted_iota(jnp.int32, (1, HW), 1)
        hh = pos // W
        ww = pos - hh * W
        row_top = hh >= 1            # taps with dy == 0 read row h-1
        row_bot = hh <= H - 2        # taps with dy == 2 read row h+1
        col_lft = ww >= 1            # taps with dx == 0 read col w-1
        col_rgt = ww <= W - 2        # taps with dx == 2 read col w+1

        # (tap index, flat spatial shift, minimal mask or None for centre tap)
        tap_info = []
        for t, (dy, dx) in enumerate(taps):
            delta = (dy - 1) * W + (dx - 1)
            terms = []
            if dy == 0:
                terms.append(row_top)
            elif dy == 2:
                terms.append(row_bot)
            if dx == 0:
                terms.append(col_lft)
            elif dx == 2:
                terms.append(col_rgt)
            mask = None
            for m in terms:
                mask = m if mask is None else (mask & m)
            tap_info.append((t, delta, mask))

        def scatter(chunk, ch0):
            """Write the 9 spatially-shifted copies of `chunk` ((nch, HW)) into
            rows [ch0, ch0+nch) of every tap plane of the im2col scratch."""
            nch = chunk.shape[0]
            for t, delta, mask in tap_info:
                if delta == 0:                       # centre tap: no roll/select
                    win = chunk
                else:
                    shifted = pltpu.roll(chunk, (roll_sign * delta) % HW, axis=1)
                    win = jnp.where(mask, shifted, jnp.zeros_like(shifted))
                patches_ref[t, ch0:ch0 + nch, :] = win

        for bi in range(BB):
            x = x_ref[bi]                            # (G0, HW), lane-dense
            scatter(x, 0)

            # 1x1 LFF accumulated incrementally in an f32 VMEM accumulator,
            # so the channel concat is never materialised.
            lff_ref[...] = jnp.dot(wlx_ref[...], x,
                                   preferred_element_type=jnp.float32)

            for c in range(C):
                Cin = G0 + c * G
                # Per-layer K-slicing: contract only written channel rows.
                acc = jnp.dot(w_ref[c, 0, :, :Cin], patches_ref[0, :Cin, :],
                              preferred_element_type=jnp.float32)
                for t in range(1, 9):
                    acc = acc + jnp.dot(w_ref[c, t, :, :Cin],
                                        patches_ref[t, :Cin, :],
                                        preferred_element_type=jnp.float32)
                y = jnp.maximum(acc + b_ref[c], 0.0)          # bias + ReLU, f32

                # incremental LFF contribution of this layer's growth chunk
                lff_ref[...] += jnp.dot(wly_ref[c], y,
                                        preferred_element_type=jnp.float32)

                if c < C - 1:                                  # feed next conv
                    scatter(y.astype(patches_ref.dtype), G0 + c * G)

            out = lff_ref[...] + bl_ref[...] + x               # LFF bias + residual
            o_ref[bi] = out.astype(o_ref.dtype)                # lane-dense store

    return kernel


# ----------------------------------------------------------------------------
# Forward (NCHW in / NCHW out, matching the PyTorch module).  kSize fixed to 3.
# ----------------------------------------------------------------------------
def rdb_forward(x_nchw, params):
    return _rdb_forward(x_nchw, params, _roll_sign(), _single_buffering_supported())


@functools.partial(jax.jit, static_argnames=("roll_sign", "single_buffer"))
def _rdb_forward(x_nchw, params, roll_sign, single_buffer):
    N, G0, H, W = x_nchw.shape
    convs = params["convs"]
    wl, bl = params["lff"]
    C = len(convs)
    G = convs[0][0].shape[-1]
    HW = H * W
    Cmax = G0 + (C - 1) * G
    dtype = x_nchw.dtype

    assert HW % 128 == 0, "flat spatial extent must be a multiple of 128 lanes"
    if dtype == jnp.bfloat16:
        assert G0 % 16 == 0 and G % 16 == 0, \
            "bf16 needs 16-aligned channel chunks for unmasked packed stores"

    # batch-blocking: process BB images per grid step (toy-size amortisation)
    BB = 1
    for cand in (8, 4, 2):
        if N % cand == 0 and N // cand >= 2:
            BB = cand
            break

    # ---- pack parameters into kernel-friendly layouts -------------------------
    # conv weights: (C, 9, G, Cmax); padded columns [Cin:Cmax) are never read.
    w_list, b_list = [], []
    for c, (w, b) in enumerate(convs):                        # w: (3,3,Cin,G) HWIO
        Cin = G0 + c * G
        wt = jnp.transpose(w, (0, 1, 3, 2)).reshape(9, G, Cin)
        wt = jnp.pad(wt, ((0, 0), (0, 0), (0, Cmax - Cin)))
        w_list.append(wt)
        b_list.append(b.reshape(G, 1))
    w_all = jnp.stack(w_list, axis=0)                         # (C, 9, G, Cmax)
    b_all = jnp.stack(b_list, axis=0)                         # (C, G, 1)
    wlx = jnp.transpose(wl[:G0, :])                           # (G0, G0)  LFF chunk for x
    wly = jnp.stack([jnp.transpose(wl[G0 + c * G: G0 + (c + 1) * G, :])
                     for c in range(C)], axis=0)              # (C, G0, G) LFF chunks y_c
    blc = bl.reshape(G0, 1)

    x2 = x_nchw.reshape(N, G0, HW)                            # NCHW, spatial flattened

    # grid-invariant operands: single-buffered when supported (saves VMEM)
    def const_spec(block_shape, index_map):
        if single_buffer:
            return pl.BlockSpec(block_shape, index_map,
                                pipeline_mode=pl.Buffered(1))
        return pl.BlockSpec(block_shape, index_map)

    kernel = _make_rdb_kernel(C=C, G0=G0, G=G, H=H, W=W, BB=BB,
                              roll_sign=roll_sign)

    out = pl.pallas_call(
        kernel,
        out_shape=jax.ShapeDtypeStruct((N, G0, HW), dtype),
        grid_spec=pltpu.PrefetchScalarGridSpec(
            num_scalar_prefetch=0,
            grid=(N // BB,),
            in_specs=[
                pl.BlockSpec((BB, G0, HW), lambda n: (n, 0, 0)),      # x (lane-dense)
                const_spec((C, 9, G, Cmax), lambda n: (0, 0, 0, 0)),  # conv weights
                const_spec((C, G, 1), lambda n: (0, 0, 0)),           # conv biases
                const_spec((G0, G0), lambda n: (0, 0)),               # LFF chunk (x)
                const_spec((C, G0, G), lambda n: (0, 0, 0)),          # LFF chunks (y_c)
                const_spec((G0, 1), lambda n: (0, 0)),                # LFF bias
            ],
            out_specs=pl.BlockSpec((BB, G0, HW), lambda n: (n, 0, 0)),
            scratch_shapes=[
                pltpu.VMEM((9, Cmax, HW), dtype),                     # im2col (per tap)
                pltpu.VMEM((G0, HW), jnp.float32),                    # LFF accumulator
            ],
        ),
        compiler_params=pltpu.CompilerParams(
            dimension_semantics=("parallel",)),
    )(x2, w_all, b_all, wlx, wly, blc)

    return out.reshape(N, G0, H, W)


# ----------------------------------------------------------------------------
# Parameter init + pure-JAX reference (for correctness check)
# ----------------------------------------------------------------------------
def rdb_init_params(key, G0, G, C, kSize=3, dtype=jnp.float32):
    assert kSize == 3, "fused kernel assumes 3x3 convs (as in RDN)"
    params = {"convs": [], "lff": None}
    keys = jax.random.split(key, 2 * C + 2)
    for c in range(C):
        Cin = G0 + c * G
        w = jax.random.normal(keys[2 * c], (kSize, kSize, Cin, G), dtype) * 0.05
        b = jax.random.normal(keys[2 * c + 1], (G,), dtype) * 0.05
        params["convs"].append((w, b))
    Ct = G0 + C * G
    wl = jax.random.normal(keys[-2], (Ct, G0), dtype) * 0.05
    bl = jax.random.normal(keys[-1], (G0,), dtype) * 0.05
    params["lff"] = (wl, bl)
    return params


def rdb_reference(x_nchw, params):
    x = jnp.transpose(x_nchw, (0, 2, 3, 1))
    feats = x
    dn = ("NHWC", "HWIO", "NHWC")
    for (w, b) in params["convs"]:
        y = lax.conv_general_dilated(feats, w, (1, 1), "SAME", dimension_numbers=dn)
        y = jnp.maximum(y + b, 0.0)
        feats = jnp.concatenate([feats, y], axis=-1)
    wl, bl = params["lff"]
    y = lax.conv_general_dilated(feats, wl.reshape(1, 1, *wl.shape), (1, 1),
                                 "SAME", dimension_numbers=dn)
    out = y + bl + x
    return jnp.transpose(out, (0, 3, 1, 2))


if __name__ == "__main__":
    # RDB(growRate0=G0, growRate=G, nConvLayers=C) at small shapes.
    G0, G, C = 8, 8, 3
    N, H, W = 4, 16, 16            # BB=2 -> 2 images per grid step, grid=(2,)

    key = jax.random.PRNGKey(0)
    k_x, k_p = jax.random.split(key)
    x = jax.random.normal(k_x, (N, G0, H, W), jnp.float32)   # NCHW input
    params = rdb_init_params(k_p, G0, G, C)

    out = jax.block_until_ready(rdb_forward(x, params))
    ref = rdb_reference(x, params)

    assert out.shape == (N, G0, H, W), out.shape
    err = float(jnp.max(jnp.abs(out - ref)))
    assert jnp.allclose(out, ref, atol=1e-4, rtol=1e-4), err

    print("KERNEL_OK")
</pallas_src>

<mosaic_0001>
module attributes {stable_mosaic.version = 11 : i64} {
  func.func @kernel(%arg0: memref<8x128xf32, #tpu.memory_space<vmem>>, %arg1: memref<8x128xf32, #tpu.memory_space<vmem>>) attributes {dimension_semantics = [], scalar_prefetch = 0 : i64, scratch_operands = 0 : i64, tpu.core_type = #tpu.core_type<tc>} {
    %c0 = arith.constant 0 : index
    %c0_0 = arith.constant 0 : index
    %0 = vector.load %arg0[%c0, %c0_0] : memref<8x128xf32, #tpu.memory_space<vmem>>, vector<8x128xf32>
    %c1_i32 = arith.constant 1 : i32
    %1 = tpu.dynamic_rotate %0 by %c1_i32 dim 1 : vector<8x128xf32>, i32 -> vector<8x128xf32>
    %c0_1 = arith.constant 0 : index
    %c0_2 = arith.constant 0 : index
    %2 = vector.load %arg1[%c0_1, %c0_2] : memref<8x128xf32, #tpu.memory_space<vmem>>, vector<8x128xf32>
    tpu.vector_store %arg1[%c0_1, %c0_2], %1 {strides = array<i32>} : memref<8x128xf32, #tpu.memory_space<vmem>>, vector<8x128xf32>,
    return
  }
}

</mosaic_0001>

<llo_original>
// kernel: tpu_custom_call.1
$region0: #{tpu_custom_call.1}
  #allocation0 [shape = 'u32[]', space=smem, size = 0x4, offset = 0x4, fixed_abs, tag = 'smem constant byte address 0x4 - core index']
  #allocation1 [shape = 'u32[144,128]{1,0:T(1,128)}', space=vmem, size = 0x12000, scoped, tag = 'internal scratch']
  %s0 = inlined_call_operand.hbm [shape: f32[8,128], index: 0, kind: input, shape index: {}]
  %s1 = inlined_call_operand.hbm [shape: f32[8,128], index: 1, kind: output, shape index: {}]
  %s2 = sld [smem:[#allocation0]]
  $region18: #{tpu_custom_call.1} parent=0
    _
  %s4 = ssub.s32 1, %s2
  %s5 = scalar_select 0, %s4, %s2
  $region1: #{tpu_custom_call.1} parent=0
    #allocation2 [shape = 'u8[4096]{0}', space=vmem, size = 0x1000, scoped, tag = 'input window, operand 0, single buffered']
    #allocation3 [shape = 's32[1]{0}', space=sflag, size = 0x4, scoped, tag = 'scoped memory for tpu_custom_call.1']
    #allocation4 [shape = 's32[1]{0}', space=sflag, size = 0x4, scoped, tag = 'scoped memory for tpu_custom_call.1']
    #allocation5 [shape = 'u8[4096]{0}', space=vmem, size = 0x1000, scoped, tag = 'output window, operand 0, single buffered']
    %6 = vsyncpa [#allocation3], 0
    %7 = vsyncpa [#allocation4], 0
    // Predicated region
    $region2: #{tpu_custom_call.1} parent=1 // pred_check
      _
    $region3: #{tpu_custom_call.1} parent=1 // pred_check_branch
      %9 = sbr.rel (0) target = $region5
    $region4: #{tpu_custom_call.1} parent=1 // pred_region
      %s11 = ssub.s32 128, 128
      %12 = vsyncadd [#allocation3], %s11
      %s14 = sshll.u32 [#allocation2], 4
      %s15 = int_to_ptr.vmem [resolvable:$true] %s14
      %17 = dma.hbm_to_vmem [thread:$0]  %s0, 128, %s15, [#allocation3]
    $region5: #{tpu_custom_call.1} parent=1 // pred_fallthru
      _
    // Predicated region
    $region6: #{tpu_custom_call.1} parent=1 // pred_check
      _
    $region7: #{tpu_custom_call.1} parent=1 // pred_check_branch
      %19 = sbr.rel (0) target = $region9
    $region8: #{tpu_custom_call.1} parent=1 // pred_region
      %20 = dma.done [#allocation3], 128
    $region9: #{tpu_custom_call.1} parent=1 // pred_fallthru
      _
    %v21 = vld [vmem:[#allocation2] sm:$0xff]
    %22 = vrot.lane.b32.xlu0 %v21, 1
    %v23 = vpop.permute.xlu0 %22
    %24 = vst [vmem:[#allocation5] sm:$0xff] %v23
    // Predicated region
    $region10: #{tpu_custom_call.1} parent=1 // pred_check
      _
    $region11: #{tpu_custom_call.1} parent=1 // pred_check_branch
      %26 = sbr.rel (0) target = $region13
    $region12: #{tpu_custom_call.1} parent=1 // pred_region
      %s28 = ssub.s32 128, 128
      %29 = vsyncadd [#allocation4], %s28
      %s31 = sshll.u32 [#allocation5], 4
      %s32 = int_to_ptr.vmem [resolvable:$true] %s31
      %34 = dma.vmem_to_hbm [thread:$0]  %s32, 128, %s1, [#allocation4]
    $region13: #{tpu_custom_call.1} parent=1 // pred_fallthru
      _
    // Predicated region
    $region14: #{tpu_custom_call.1} parent=1 // pred_check
      _
    $region15: #{tpu_custom_call.1} parent=1 // pred_check_branch
      %36 = sbr.rel (0) target = $region17
    $region16: #{tpu_custom_call.1} parent=1 // pred_region
      %37 = dma.done [#allocation4], 128
    $region17: #{tpu_custom_call.1} parent=1 // pred_fallthru
      _
    %38 = vsyncpa [#allocation3], 1
    %39 = vsyncpa [#allocation4], 1

</llo_original>
